<compile_context>
chip_gen: v5e
topology: v5e:2x2
jax: 0.10.0
libtpu: 0.0.40
codegen_flags: <defaults>
</compile_context>

<pallas_src>
import functools

import jax
import jax.numpy as jnp
from jax.experimental import pallas as pl
from jax.experimental.pallas import tpu as pltpu

_F32 = 4  # bytes per float32


def _round_up(x, m):
    return (x + m - 1) // m * m


def _pick_tile(np128, target):
    """Largest multiple of 128 that divides np128 (a multiple of 128) and is <= target."""
    tn = max(128, min(target // 128 * 128, np128))
    while np128 % tn:
        tn -= 128
    return tn


# --------------------------------------------------------------------------- #
# Fused path: one kernel per batch element.                                    #
# --------------------------------------------------------------------------- #
def _cam_fused_kernel(gamma_ref, x_ref, o_ref, *, compute_dtype):
    x = x_ref[0]                                       # (C, N) f32
    xm = x.astype(compute_dtype)                       # no-op for f32
    # energy = x @ x^T: contract the spatial axis of both operands directly on
    # the MXU (dot_general ((1,),(1,))) -- no materialized transpose of x.
    energy = jax.lax.dot_general(
        xm, xm, dimension_numbers=(((1,), (1,)), ((), ())),
        preferred_element_type=jnp.float32)            # (C, C)
    # CAM softmax: softmax(rowmax(energy) - energy) along the last dim.
    energy_new = jnp.max(energy, axis=-1, keepdims=True) - energy
    e = jnp.exp(energy_new - jnp.max(energy_new, axis=-1, keepdims=True))
    attn = e / jnp.sum(e, axis=-1, keepdims=True)      # exact divide for parity
    out = jnp.dot(attn.astype(compute_dtype), xm,
                  preferred_element_type=jnp.float32)  # (C, N)
    o_ref[0] = gamma_ref[0] * out + x


def _cam_fused(x, gamma, compute_dtype, vmem_budget):
    B, C, N = x.shape
    slab = C * N * _F32
    vmem_need = 4 * slab + 8 * C * C * _F32 + (2 << 20)
    return pl.pallas_call(
        functools.partial(_cam_fused_kernel, compute_dtype=compute_dtype),
        out_shape=jax.ShapeDtypeStruct((B, C, N), jnp.float32),
        grid_spec=pltpu.PrefetchScalarGridSpec(
            num_scalar_prefetch=0,
            grid=(B,),
            in_specs=[
                pl.BlockSpec(memory_space=pltpu.MemorySpace.SMEM),  # gamma (1,)
                pl.BlockSpec((1, C, N), lambda b: (b, 0, 0)),       # x slab
            ],
            out_specs=pl.BlockSpec((1, C, N), lambda b: (b, 0, 0)),
        ),
        compiler_params=pltpu.CompilerParams(
            # B is the only parallel axis; B >= 2 feeds both v7x TensorCores.
            # (For B == 1 on v7x one could additionally split N into two
            #  parallel chunks with a tiny combine epilogue -- not done here.)
            dimension_semantics=("parallel",),
            vmem_limit_bytes=int(min(max(vmem_need, 32 << 20), vmem_budget)),
        ),
        cost_estimate=pl.CostEstimate(
            flops=4 * B * C * C * N,
            transcendentals=B * C * C,
            bytes_accessed=2 * B * C * N * _F32 + _F32),
        # No input_output_aliases here: x is typically a zero-copy view of the
        # caller's input, and forcing aliasing would make XLA insert a
        # defensive copy of the whole tensor.
    )(gamma, x)


# --------------------------------------------------------------------------- #
# Two-stage fallback for very large per-batch slabs.                           #
# --------------------------------------------------------------------------- #
def _cam_energy_kernel(x_ref, attn_ref, *, compute_dtype):
    k = pl.program_id(1)

    @pl.when(k == 0)
    def _():
        attn_ref[...] = jnp.zeros_like(attn_ref)

    x = x_ref[0].astype(compute_dtype)                 # (C, tn)
    # Accumulate energy directly into the resident output block (its index_map
    # is (b, 0, 0) for every k, so it stays in VMEM for the whole reduction).
    attn_ref[0] += jax.lax.dot_general(
        x, x, dimension_numbers=(((1,), (1,)), ((), ())),
        preferred_element_type=jnp.float32)

    @pl.when(k == pl.num_programs(1) - 1)
    def _():
        energy = attn_ref[0]                           # (C, C)
        energy_new = jnp.max(energy, axis=-1, keepdims=True) - energy
        e = jnp.exp(energy_new - jnp.max(energy_new, axis=-1, keepdims=True))
        attn_ref[0] = e / jnp.sum(e, axis=-1, keepdims=True)


def _cam_apply_kernel(gamma_ref, attn_ref, x_ref, o_ref, *, compute_dtype):
    x = x_ref[0]                                       # (C, tn)
    out = jnp.dot(attn_ref[0].astype(compute_dtype), x.astype(compute_dtype),
                  preferred_element_type=jnp.float32)
    o_ref[0] = gamma_ref[0] * out + x


def _cam_two_stage(x, gamma, compute_dtype, tn_target):
    B, C, N = x.shape
    Np = _round_up(N, 128)
    padded = Np != N
    if padded:
        # Pad only to the next multiple of 128 (< 128 wasted columns).  Zero
        # columns leave energy = x @ x^T unchanged; the extra output columns
        # are sliced off below.
        # TODO(synk): replace this pad/slice with an in-kernel tail-lane mask +
        # clipped partial stores to also remove this (small) HBM round-trip.
        x = jnp.pad(x, ((0, 0), (0, 0), (0, Np - N)))
    tn = _pick_tile(Np, tn_target)
    kn = Np // tn

    # ---- Stage 1: attention = softmax(rowmax - energy), energy reduced over N
    s1_vmem = 3 * C * tn * _F32 + 2 * C * C * _F32 + (1 << 20)
    attn = pl.pallas_call(
        functools.partial(_cam_energy_kernel, compute_dtype=compute_dtype),
        out_shape=jax.ShapeDtypeStruct((B, C, C), jnp.float32),
        grid_spec=pltpu.PrefetchScalarGridSpec(
            num_scalar_prefetch=0,
            grid=(B, kn),
            in_specs=[pl.BlockSpec((1, C, tn), lambda b, k: (b, 0, k))],
            out_specs=pl.BlockSpec((1, C, C), lambda b, k: (b, 0, 0)),
        ),
        compiler_params=pltpu.CompilerParams(
            dimension_semantics=("parallel", "arbitrary"),
            vmem_limit_bytes=int(min(max(s1_vmem, 32 << 20), 64 << 20))),
        cost_estimate=pl.CostEstimate(
            flops=2 * B * C * C * Np,
            transcendentals=B * C * C,
            bytes_accessed=(B * C * Np + B * C * C) * _F32),
    )(x)

    # ---- Stage 2: out = gamma * (attn @ x) + x, tiled over N
    s2_vmem = 4 * C * tn * _F32 + 2 * C * C * _F32 + (1 << 20)
    out = pl.pallas_call(
        functools.partial(_cam_apply_kernel, compute_dtype=compute_dtype),
        out_shape=jax.ShapeDtypeStruct((B, C, Np), jnp.float32),
        grid_spec=pltpu.PrefetchScalarGridSpec(
            num_scalar_prefetch=0,
            grid=(B, kn),
            in_specs=[
                pl.BlockSpec(memory_space=pltpu.MemorySpace.SMEM),   # gamma
                pl.BlockSpec((1, C, C), lambda b, k: (b, 0, 0)),     # attention
                pl.BlockSpec((1, C, tn), lambda b, k: (b, 0, k)),    # x
            ],
            out_specs=pl.BlockSpec((1, C, tn), lambda b, k: (b, 0, k)),
        ),
        compiler_params=pltpu.CompilerParams(
            dimension_semantics=("parallel", "parallel"),
            vmem_limit_bytes=int(min(max(s2_vmem, 32 << 20), 64 << 20))),
        cost_estimate=pl.CostEstimate(
            flops=2 * B * C * C * Np,
            transcendentals=0,
            bytes_accessed=(2 * B * C * Np + B * C * C) * _F32),
        # Alias x -> out only when x is a fresh padded temp; aliasing a view of
        # the caller's input would force XLA to insert a defensive copy.
        input_output_aliases=({2: 0} if padded else {}),
    )(gamma, attn, x)

    if padded:
        out = out[:, :, :N]
    return out


# --------------------------------------------------------------------------- #
# Public forward.                                                              #
# --------------------------------------------------------------------------- #
def cam_forward(xl, gamma, *, compute_dtype=jnp.float32, tn_target=1024,
                fused_vmem_budget=48 << 20, force_two_stage=False):
    """CAM_Module.forward.  xl: (B, C, H, W, channle) -> same shape."""
    B, C, H, W, ch = xl.shape
    N = H * W * ch
    x = xl.reshape(B, C, N).astype(jnp.float32)        # free reshape / no-op cast
    g = jnp.asarray(gamma, jnp.float32).reshape(1)

    slab = C * N * _F32
    fused_need = 4 * slab + 8 * C * C * _F32 + (2 << 20)
    if (not force_two_stage) and fused_need <= fused_vmem_budget:
        out = _cam_fused(x, g, compute_dtype, fused_vmem_budget)
    else:
        out = _cam_two_stage(x, g, compute_dtype, tn_target)
    return out.reshape(B, C, H, W, ch)


def _reference(xl, gamma):
    """Pure-JAX reference mirroring the PyTorch CAM forward."""
    B, C, H, W, ch = xl.shape
    x = xl.reshape(B, C, -1).astype(jnp.float32)
    energy = jnp.einsum('bcn,bdn->bcd', x, x,
                        precision=jax.lax.Precision.HIGHEST)
    energy_new = jnp.max(energy, axis=-1, keepdims=True) - energy
    attn = jax.nn.softmax(energy_new, axis=-1)
    out = jnp.einsum('bcd,bdn->bcn', attn, x,
                     precision=jax.lax.Precision.HIGHEST)
    out = jnp.asarray(gamma, jnp.float32).reshape(()) * out + x
    return out.reshape(B, C, H, W, ch)


if __name__ == "__main__":
    # 5-D input consistent with the module's forward: (B, C, H, W, channle).
    B, C, H, W, ch = 2, 16, 8, 8, 3          # N = H*W*ch = 192

    key = jax.random.PRNGKey(0)
    xl = jax.random.normal(key, (B, C, H, W, ch), dtype=jnp.float32)

    # gamma initializes to zeros in the module; also test a non-zero value so
    # the attention path is actually exercised.
    for g in (jnp.zeros((1,), jnp.float32), jnp.full((1,), 0.5, jnp.float32)):
        ref = _reference(xl, g)

        # Fused single-pallas_call path (default for small per-batch slabs).
        out = jax.block_until_ready(cam_forward(xl, g))
        assert out.shape == xl.shape
        err = float(jnp.max(jnp.abs(out - ref)))
        assert jnp.allclose(out, ref, atol=2e-3, rtol=2e-3), err

        # Two-stage fallback, forced, with tn=128 -> 2 N-tiles (N=192 -> Np=256)
        # so the k-reduction / accumulate-into-output path is exercised.
        out2 = jax.block_until_ready(
            cam_forward(xl, g, force_two_stage=True, tn_target=128))
        assert out2.shape == xl.shape
        err2 = float(jnp.max(jnp.abs(out2 - ref)))
        assert jnp.allclose(out2, ref, atol=2e-3, rtol=2e-3), err2

    print("KERNEL_OK")
</pallas_src>

<mosaic_0001>
module attributes {stable_mosaic.version = 11 : i64} {
  func.func @_cam_fused_kernel(%arg0: i32, %arg1: memref<1xf32, #tpu.memory_space<smem>>, %arg2: memref<1x16x192xf32, #tpu.memory_space<vmem>>, %arg3: memref<1x16x192xf32, #tpu.memory_space<vmem>>) attributes {dimension_semantics = [#tpu.dimension_semantics<parallel>], iteration_bounds = array<i64: 2>, scalar_prefetch = 0 : i64, scratch_operands = 0 : i64, tpu.core_type = #tpu.core_type<tc>, window_params = [{transform_indices = @transform_0, window_bounds = array<i64: 1>}, {transform_indices = @transform_1, window_bounds = array<i64: 1, 16, 192>}, {transform_indices = @transform_2, window_bounds = array<i64: 1, 16, 192>}]} {
    %c0 = arith.constant 0 : index
    %c0_0 = arith.constant 0 : index
    %c0_1 = arith.constant 0 : index
    %0 = vector.load %arg2[%c0, %c0_0, %c0_1] : memref<1x16x192xf32, #tpu.memory_space<vmem>>, vector<1x16x192xf32>
    %1 = vector.shape_cast %0 : vector<1x16x192xf32> to vector<16x192xf32>
    %cst = arith.constant dense<0.000000e+00> : vector<16x16xf32>
    %2 = tpu.matmul %1, %1, %cst {dimension_numbers = #tpu.dot_dimension_numbers<[1], [1], [0], [0], [0, 0, 1, 0], [], []>} : vector<16x192xf32>, vector<16x192xf32>, vector<16x16xf32> -> vector<16x16xf32>
    %cst_2 = arith.constant dense<0xFF800000> : vector<16xf32>
    %3 = vector.multi_reduction <maximumf>, %2, %cst_2 [1] : vector<16x16xf32> to vector<16xf32>
    %4 = vector.shape_cast %3 : vector<16xf32> to vector<16x1xf32>
    %5 = vector.broadcast %4 : vector<16x1xf32> to vector<16x16xf32>
    %6 = arith.subf %5, %2 : vector<16x16xf32>
    %cst_3 = arith.constant dense<0xFF800000> : vector<16xf32>
    %7 = vector.multi_reduction <maximumf>, %6, %cst_3 [1] : vector<16x16xf32> to vector<16xf32>
    %8 = vector.shape_cast %7 : vector<16xf32> to vector<16x1xf32>
    %9 = vector.broadcast %8 : vector<16x1xf32> to vector<16x16xf32>
    %10 = arith.subf %6, %9 : vector<16x16xf32>
    %11 = math.exp %10 : vector<16x16xf32>
    %cst_4 = arith.constant dense<0.000000e+00> : vector<16xf32>
    %12 = vector.multi_reduction <add>, %11, %cst_4 [1] : vector<16x16xf32> to vector<16xf32>
    %13 = vector.shape_cast %12 : vector<16xf32> to vector<16x1xf32>
    %14 = vector.broadcast %13 : vector<16x1xf32> to vector<16x16xf32>
    %15 = arith.divf %11, %14 : vector<16x16xf32>
    %cst_5 = arith.constant dense<0.000000e+00> : vector<16x192xf32>
    %16 = tpu.matmul %15, %1, %cst_5 {dimension_numbers = #tpu.dot_dimension_numbers<[1], [0], [0], [1], [0, 0, 1, 1], [], []>} : vector<16x16xf32>, vector<16x192xf32>, vector<16x192xf32> -> vector<16x192xf32>
    %c0_6 = arith.constant 0 : index
    %17 = memref.load %arg1[%c0_6] : memref<1xf32, #tpu.memory_space<smem>>
    %18 = vector.broadcast %17 : f32 to vector<16x192xf32>
    %19 = arith.mulf %18, %16 : vector<16x192xf32>
    %20 = arith.addf %19, %1 : vector<16x192xf32>
    %c0_7 = arith.constant 0 : index
    %c0_8 = arith.constant 0 : index
    %c0_9 = arith.constant 0 : index
    %21 = vector.load %arg3[%c0_7, %c0_8, %c0_9] : memref<1x16x192xf32, #tpu.memory_space<vmem>>, vector<1x16x192xf32>
    %22 = vector.shape_cast %21 : vector<1x16x192xf32> to vector<16x192xf32>
    %23 = vector.shape_cast %20 : vector<16x192xf32> to vector<1x16x192xf32>
    tpu.vector_store %arg3[%c0_7, %c0_8, %c0_9], %23 {strides = array<i32>} : memref<1x16x192xf32, #tpu.memory_space<vmem>>, vector<1x16x192xf32>,
    return
  }
  func.func @transform_0(%arg0: i32) -> i32 {
    %c0_i32 = arith.constant 0 : i32
    %c0_i32_0 = arith.constant 0 : i32
    return %c0_i32 : i32
  }
  func.func @transform_1(%arg0: i32) -> (i32, i32, i32) {
    %c0_i32 = arith.constant 0 : i32
    %c0_i32_0 = arith.constant 0 : i32
    %c0_i32_1 = arith.constant 0 : i32
    return %arg0, %c0_i32, %c0_i32_0 : i32, i32, i32
  }
  func.func @transform_2(%arg0: i32) -> (i32, i32, i32) {
    %c0_i32 = arith.constant 0 : i32
    %c0_i32_0 = arith.constant 0 : i32
    %c0_i32_1 = arith.constant 0 : i32
    return %arg0, %c0_i32, %c0_i32_0 : i32, i32, i32
  }
}

</mosaic_0001>

<llo_original>
// kernel: tpu_custom_call.1
$region0: #{tpu_custom_call.1}
  #allocation0 [shape = 'u32[]', space=smem, size = 0x4, offset = 0x4, fixed_abs, tag = 'smem constant byte address 0x4 - core index']
  #allocation1 [shape = 'u32[72,128]{1,0:T(1,128)}', space=vmem, size = 0x9000, scoped, tag = 'internal scratch']
  #allocation2 [shape = 'f32[1]{0:T(128)S(6)}', space=smem, size = 0x200, scoped, tag = 'scoped memory for tpu_custom_call.1']
  %s0 = inlined_call_operand.<no memory space> [shape: f32[1], index: 0, kind: input, shape index: {}]
  %s1 = inlined_call_operand.hbm [shape: f32[2,16,192], index: 1, kind: input, shape index: {}]
  %s2 = inlined_call_operand.hbm [shape: f32[2,16,192], index: 2, kind: output, shape index: {}]
  %s3 = sld [smem:[#allocation0]]
  $region45: #{tpu_custom_call.1} parent=0
    _
  %s5 = ssub.s32 1, %s3
  %s6 = scalar_select 0, %s5, %s3
  %7 = sst [smem:[#allocation2]] %s0
  $region1: #{tpu_custom_call.1} parent=0
    #allocation3 [shape = 'u8[32768]{0}', space=vmem, size = 0x8000, scoped, tag = 'input window, operand 1']
    #allocation4 [shape = 's32[2]{0}', space=sflag, size = 0x8, scoped, tag = 'scoped memory for tpu_custom_call.1']
    #allocation5 [shape = 's32[2]{0}', space=sflag, size = 0x8, scoped, tag = 'scoped memory for tpu_custom_call.1']
    #allocation6 [shape = 'u8[32768]{0}', space=vmem, size = 0x8000, scoped, tag = 'output window, operand 0']
    %8 = vsyncpa [#allocation4], 0
    %s9 = scalar_lea.sflag [#allocation4], 1
    %10 = vsyncpa %s9, 0
    %11 = vsyncpa [#allocation5], 0
    %s12 = scalar_lea.sflag [#allocation5], 1
    %13 = vsyncpa %s12, 0
    loop: start=0, step=1, limit=4
    $region2: #{tpu_custom_call.1} parent=1 // loop_pre_header
      _
    $region3: #{tpu_custom_call.1} parent=1 // loop_header
      %s15 = sphi 0, %s19
      %p16 = scmp.ge.s32.totalorder %s15, 4
      %s23 = sphi 0, %s23
      %s25 = sphi 0, %s23
      %s26 = sphi 0, %s25
      %s40 = sphi 0, %s26
      %s46 = sphi 0, %s48
      %s49 = sphi 0, %s46
      %s50 = sphi 0, %s49
      %s66 = sphi 0, %s50
      %s72 = sphi 0, %s74
      %s75 = sphi 0, %s72
      %s76 = sphi 0, %s75
      %s92 = sphi 0, %s76
    $region4: #{tpu_custom_call.1} parent=1 // loop_header_branch
      %18 = sbr.rel (%p16) target = $region8
    $region5: #{tpu_custom_call.1} parent=1 // loop_body
      %s20 = ssub.s32 %s15, 1
      %s21 = ssub.s32 %s15, 2
      %s22 = sadd.s32 %s15, 1
      %s24 = sadd.s32 %s23, 1
      %p27 = scmp.eq.s32.totalorder %s15, 1
      %p28 = scmp.ne.s32.totalorder %s23, %s25
      %p29 = scmp.eq.s32.totalorder %s15, 0
      %p30 = por %p28, %p29
      %p31 = scmp.ne.s32.totalorder %s23, %s25
      %p32 = scmp.eq.s32.totalorder %s20, 1
      %p33 = por %p31, %p32
      %p34 = scmp.ne.s32.totalorder %s25, %s26
      %p35 = scmp.eq.s32.totalorder %s20, 0
      %p36 = por %p34, %p35
      %p37 = scmp.ne.s32.totalorder %s25, %s26
      %p38 = scmp.eq.s32.totalorder %s21, 1
      %p39 = por %p37, %p38
      %p41 = scmp.ne.s32.totalorder %s26, %s40
      %p42 = scmp.eq.s32.totalorder %s21, 0
      %p43 = por %p41, %p42
      %s44 = ssub.s32 %s15, %s22
      %p45 = scmp.eq.s32.totalorder %s44, 0
      %s47 = sadd.s32 %s46, 1
      %s48 = scalar_select %p45, %s46, %s47
      %p51 = pneg %p45
      %p52 = scmp.eq.s32.totalorder %s15, 1
      %p53 = por %p51, %p52
      %p54 = scmp.ne.s32.totalorder %s46, %s49
      %p55 = scmp.eq.s32.totalorder %s15, 0
      %p56 = por %p54, %p55
      %p57 = scmp.ne.s32.totalorder %s46, %s49
      %p58 = scmp.eq.s32.totalorder %s20, 1
      %p59 = por %p57, %p58
      %p60 = scmp.ne.s32.totalorder %s49, %s50
      %p61 = scmp.eq.s32.totalorder %s20, 0
      %p62 = por %p60, %p61
      %p63 = scmp.ne.s32.totalorder %s49, %s50
      %p64 = scmp.eq.s32.totalorder %s21, 1
      %p65 = por %p63, %p64
      %p67 = scmp.ne.s32.totalorder %s50, %s66
      %p68 = scmp.eq.s32.totalorder %s21, 0
      %p69 = por %p67, %p68
      %s70 = ssub.s32 %s15, %s22
      %p71 = scmp.eq.s32.totalorder %s70, 0
      %s73 = sadd.s32 %s72, 1
      %s74 = scalar_select %p71, %s72, %s73
      %p77 = pneg %p71
      %p78 = scmp.eq.s32.totalorder %s15, 1
      %p79 = por %p77, %p78
      %p80 = scmp.ne.s32.totalorder %s72, %s75
      %p81 = scmp.eq.s32.totalorder %s15, 0
      %p82 = por %p80, %p81
      %p83 = scmp.ne.s32.totalorder %s72, %s75
      %p84 = scmp.eq.s32.totalorder %s20, 1
      %p85 = por %p83, %p84
      %p86 = scmp.ne.s32.totalorder %s75, %s76
      %p87 = scmp.eq.s32.totalorder %s20, 0
      %p88 = por %p86, %p87
      %p89 = scmp.ne.s32.totalorder %s75, %s76
      %p90 = scmp.eq.s32.totalorder %s21, 1
      %p91 = por %p89, %p90
      %p93 = scmp.ne.s32.totalorder %s76, %s92
      %p94 = scmp.eq.s32.totalorder %s21, 0
      %p95 = por %p93, %p94
      %p96 = scmp.le.s32.totalorder 1, %s15
      %p97 = scmp.lt.s32.totalorder %s15, 3
      %p98 = pnand %p96, %p97
      %p99 = pneg %p98
      // Predicated region
      $region9: #{tpu_custom_call.1} parent=5 // pred_check
        _
      $region10: #{tpu_custom_call.1} parent=5 // pred_check_branch
        %101 = sbr.rel (%p98) target = $region12
      $region11: #{tpu_custom_call.1} parent=5 // pred_region
        %s102 = ssub.s32 %s15, 1
        // Predicated region
        $region13: #{tpu_custom_call.1} parent=11 // pred_check
          %p103 = pneg %p36
        $region14: #{tpu_custom_call.1} parent=11 // pred_check_branch
          %105 = sbr.rel (%p103) target = $region16
        $region15: #{tpu_custom_call.1} parent=11 // pred_region
          _
        $region16: #{tpu_custom_call.1} parent=11 // pred_fallthru
          _
      $region12: #{tpu_custom_call.1} parent=5 // pred_fallthru
        _
      %p106 = scmp.lt.s32.totalorder %s15, 2
      // Predicated region
      $region17: #{tpu_custom_call.1} parent=5 // pred_check
        %p107 = pneg %p106
      $region18: #{tpu_custom_call.1} parent=5 // pred_check_branch
        %109 = sbr.rel (%p107) target = $region20
      $region19: #{tpu_custom_call.1} parent=5 // pred_region
        // Predicated region
        $region21: #{tpu_custom_call.1} parent=19 // pred_check
          %p110 = pneg %p56
        $region22: #{tpu_custom_call.1} parent=19 // pred_check_branch
          %112 = sbr.rel (%p110) target = $region24
        $region23: #{tpu_custom_call.1} parent=19 // pred_region
          %s113 = sand.u32 %s46, 1
          %s114 = scalar_lea.sflag [#allocation4], %s113
          %s115 = sand.u32 %s46, 1
          %s116 = smul.addr %s115, 32
          %s117 = scalar_lea.vmem [#allocation3], %s116
          %119 = vsyncadd %s114, 0
          %s120 = smul.addr %s15, 4
          %s121 = smul.addr %s120, 8
          %s122 = scalar_lea.hbm %s1, %s121
          %s123 = sshll.u32 %s122, 4
          %s124 = int_to_ptr.hbm [resolvable:$true] %s123
          %s125 = sshll.u32 %s117, 4
          %s126 = int_to_ptr.vmem [resolvable:$true] %s125
          %131 = dma.hbm_to_vmem [thread:$0]  %s124, 512, %s126, %s114, 256, 256, 16
        $region24: #{tpu_custom_call.1} parent=19 // pred_fallthru
          _
      $region20: #{tpu_custom_call.1} parent=5 // pred_fallthru
        _
      %p132 = scmp.le.s32.totalorder 1, %s15
      %p133 = scmp.lt.s32.totalorder %s15, 3
      %p134 = pnand %p132, %p133
      %p135 = pneg %p134
      // Predicated region
      $region25: #{tpu_custom_call.1} parent=5 // pred_check
        _
      $region26: #{tpu_custom_call.1} parent=5 // pred_check_branch
        %137 = sbr.rel (%p134) target = $region28
      $region27: #{tpu_custom_call.1} parent=5 // pred_region
        %s138 = ssub.s32 %s15, 1
        %s139 = sand.u32 %s49, 1
        %s140 = scalar_lea.sflag [#allocation4], %s139
        %s141 = sand.u32 %s49, 1
        %s142 = smul.addr %s141, 32
        %s143 = scalar_lea.vmem [#allocation3], %s142
        // Predicated region
        $region29: #{tpu_custom_call.1} parent=27 // pred_check
          %p144 = pneg %p62
        $region30: #{tpu_custom_call.1} parent=27 // pred_check_branch
          %146 = sbr.rel (%p144) target = $region32
        $region31: #{tpu_custom_call.1} parent=27 // pred_region
          %148 = dma.done %s140, 512
        $region32: #{tpu_custom_call.1} parent=27 // pred_fallthru
          _
        %p149 = pneg %p36
        %p150 = pneg %p33
        %s151 = sand.u32 %s49, 1
        %s152 = scalar_lea.sflag [#allocation4], %s151
        %s153 = sand.u32 %s49, 1
        %s154 = smul.addr %s153, 32
        %s155 = scalar_lea.vmem [#allocation3], %s154
        %p156 = pneg %p62
        %p157 = pneg %p59
        %p158 = pneg %p88
        %p159 = pneg %p85
        %s160 = sand.u32 %s75, 1
        %s161 = scalar_lea.sflag [#allocation5], %s160
        %s162 = sand.u32 %s75, 1
        %s163 = smul.addr %s162, 32
        %s164 = scalar_lea.vmem [#allocation6], %s163
        %v165 = vld [vmem:[%s143] sm:$0xff]
        %v166 = vld [vmem:[%s143 + $0x8] sm:$0xff]
        %v167 = vld [vmem:[%s143 + $0x10] sm:$0xff]
        %v168 = vld [vmem:[%s143 + $0x18] sm:$0xff]
        %vm169 = vcmask 523264
        %v171 = vsel %vm169, %v166, 0
        %v174 = vsel %vm169, %v168, 0
        %176 = vmatpush.xpose.msra.mxu0 0.0
        %177 = vmatpush.xpose.msra.mxu0 0.0
        %178 = vmatpush.xpose.msra.mxu0 0.0
        %179 = vmatpush.xpose.msra.mxu0 0.0
        %180 = vmatpush.xpose.msra.mxu0 0.0
        %181 = vmatpush.xpose.msra.mxu0 0.0
        %182 = vmatpush.xpose.msra.mxu0 0.0
        %183 = vmatpush.xpose.msra.mxu0 0.0
        %184 = vmatpush.xpose.msra.mxu0 0.0
        %185 = vmatpush.xpose.msra.mxu0 0.0
        %186 = vmatpush.xpose.msra.mxu0 0.0
        %187 = vmatpush.xpose.msra.mxu0 0.0
        %188 = vmatpush.xpose.msra.mxu0 0.0
        %189 = vmatpush.xpose.msra.mxu0 0.0
        %190 = vmatpush.xpose.msra.mxu0 %v167
        %191 = vmatpush.xpose.msra.mxu0 %v165
        %192 = vmatmul.f32.gmra.mxu0 %v165
        %v193 = vpop.f32.mrf.mxu0
        %v194 = vadd.f32 0.0, %v193
        %195 = vmatmul.f32.gmra.mxu0 %v167
        %v196 = vpop.f32.mrf.mxu0
        %v197 = vadd.f32 0.0, %v196
        %198 = vdwg.mxu0
        %199 = vmatpush.xpose.msra.mxu0 0.0
        %200 = vmatpush.xpose.msra.mxu0 0.0
        %201 = vmatpush.xpose.msra.mxu0 0.0
        %202 = vmatpush.xpose.msra.mxu0 0.0
        %203 = vmatpush.xpose.msra.mxu0 0.0
        %204 = vmatpush.xpose.msra.mxu0 0.0
        %205 = vmatpush.xpose.msra.mxu0 0.0
        %206 = vmatpush.xpose.msra.mxu0 0.0
        %207 = vmatpush.xpose.msra.mxu0 0.0
        %208 = vmatpush.xpose.msra.mxu0 0.0
        %209 = vmatpush.xpose.msra.mxu0 0.0
        %210 = vmatpush.xpose.msra.mxu0 0.0
        %211 = vmatpush.xpose.msra.mxu0 0.0
        %212 = vmatpush.xpose.msra.mxu0 0.0
        %213 = vmatpush.xpose.msra.mxu0 %v174
        %214 = vmatpush.xpose.msra.mxu0 %v171
        %215 = vmatmul.f32.gmra.mxu0 %v171
        %v216 = vpop.f32.mrf.mxu0
        %v217 = vadd.f32 %v194, %v216
        %218 = vmatmul.f32.gmra.mxu0 %v174
        %v219 = vpop.f32.mrf.mxu0
        %v220 = vadd.f32 %v197, %v219
        %221 = vdwg.mxu0
        %vm222 = vcmask 130048
        %v223 = vsel %vm222, %v217, -inf
        %224 = vmax.xlane.f32.xlu0 %v223
        %v225 = vpop.xlane.xlu0 %224
        %v226 = vsel %vm222, %v220, -inf
        %227 = vmax.xlane.f32.xlu0 %v226
        %v228 = vpop.xlane.xlu0 %227
        %v229 = vsub.f32 %v225, %v217
        %v230 = vsub.f32 %v228, %v220
        %v231 = vsel %vm222, %v229, -inf
        %232 = vmax.xlane.f32.xlu0 %v231
        %v233 = vpop.xlane.xlu0 %232
        %v234 = vsel %vm222, %v230, -inf
        %235 = vmax.xlane.f32.xlu0 %v234
        %v236 = vpop.xlane.xlu0 %235
        %v237 = vsub.f32 %v229, %v233
        %v238 = vsub.f32 %v230, %v236
        %v239 = vmul.f32 %v237, 1.442695
        %v240 = vpow.pop %v239
        %v241 = vmul.f32 %v238, 1.442695
        %v242 = vpow.pop %v241
        %v243 = vsel %vm222, %v240, 0.0
        %244 = vadd.xlane.f32.xlu0 %v243
        %v245 = vpop.xlane.xlu0 %244
        %v246 = vsel %vm222, %v242, 0.0
        %247 = vadd.xlane.f32.xlu0 %v246
        %v248 = vpop.xlane.xlu0 %247
        %v249 = vrcp.pop %v245
        %v250 = vmul.f32 %v245, %v249
        %v251 = vsub.f32 1.0, %v250
        %v252 = vmul.f32 %v249, %v251
        %v253 = vadd.f32 %v249, %v252
        %vm254 = vweird.f32 %v245
        %vm255 = vweird.f32 %v249
        %vm256 = vmor %vm254, %vm255
        %v257 = vsel %vm256, %v249, %v253
        %v258 = vand.u32 2147483647, %v245
        %vm259 = vcmp.eq.f32.partialorder %v258, 8.507059e+37
        %v260 = vand.u32 %v245, 2147483648
        %v261 = vor.u32 1.1754944e-38, %v260
        %v262 = vsel %vm259, %v261, %v257
        %v263 = vmul.f32 %v240, %v262
        %v264 = vrcp.pop %v248
        %v265 = vmul.f32 %v248, %v264
        %v266 = vsub.f32 1.0, %v265
        %v267 = vmul.f32 %v264, %v266
        %v268 = vadd.f32 %v264, %v267
        %vm269 = vweird.f32 %v248
        %vm270 = vweird.f32 %v264
        %vm271 = vmor %vm269, %vm270
        %v272 = vsel %vm271, %v264, %v268
        %v273 = vand.u32 2147483647, %v248
        %vm274 = vcmp.eq.f32.partialorder %v273, 8.507059e+37
        %v275 = vand.u32 %v248, 2147483648
        %v276 = vor.u32 1.1754944e-38, %v275
        %v277 = vsel %vm274, %v276, %v272
        %v278 = vmul.f32 %v242, %v277
        %v280 = vsel %vm222, %v263, 0
        %v283 = vsel %vm222, %v278, 0
        %285 = vmatpush.msra.mxu0 0.0
        %286 = vmatpush.msra.mxu0 0.0
        %287 = vmatpush.msra.mxu0 0.0
        %288 = vmatpush.msra.mxu0 0.0
        %289 = vmatpush.msra.mxu0 0.0
        %290 = vmatpush.msra.mxu0 0.0
        %291 = vmatpush.msra.mxu0 0.0
        %292 = vmatpush.msra.mxu0 0.0
        %293 = vmatpush.msra.mxu0 0.0
        %294 = vmatpush.msra.mxu0 0.0
        %295 = vmatpush.msra.mxu0 0.0
        %296 = vmatpush.msra.mxu0 0.0
        %297 = vmatpush.msra.mxu0 0.0
        %298 = vmatpush.msra.mxu0 0.0
        %299 = vmatpush.msra.mxu0 %v167
        %300 = vmatpush.msra.mxu0 %v165
        %301 = vmatmul.f32.gmra.mxu0 %v280
        %v302 = vpop.f32.mrf.mxu0
        %v303 = vadd.f32 0.0, %v302
        %304 = vmatmul.f32.gmra.mxu0 %v283
        %v305 = vpop.f32.mrf.mxu0
        %v306 = vadd.f32 0.0, %v305
        %307 = vdwg.mxu0
        %308 = vmatpush.msra.mxu0 0.0
        %309 = vmatpush.msra.mxu0 0.0
        %310 = vmatpush.msra.mxu0 0.0
        %311 = vmatpush.msra.mxu0 0.0
        %312 = vmatpush.msra.mxu0 0.0
        %313 = vmatpush.msra.mxu0 0.0
        %314 = vmatpush.msra.mxu0 0.0
        %315 = vmatpush.msra.mxu0 0.0
        %316 = vmatpush.msra.mxu0 0.0
        %317 = vmatpush.msra.mxu0 0.0
        %318 = vmatpush.msra.mxu0 0.0
        %319 = vmatpush.msra.mxu0 0.0
        %320 = vmatpush.msra.mxu0 0.0
        %321 = vmatpush.msra.mxu0 0.0
        %322 = vmatpush.msra.mxu0 %v168
        %323 = vmatpush.msra.mxu0 %v166
        %324 = vmatmul.f32.gmra.mxu0 %v280
        %v325 = vpop.f32.mrf.mxu0
        %v326 = vadd.f32 0.0, %v325
        %327 = vmatmul.f32.gmra.mxu0 %v283
        %v328 = vpop.f32.mrf.mxu0
        %v329 = vadd.f32 0.0, %v328
        %330 = vdwg.mxu0
        %s331 = sld [smem:[#allocation2]]
        %v332 = vstv %s331
        %v333 = vmul.f32 %v332, %v303
        %v334 = vmul.f32 %v332, %v326
        %v335 = vmul.f32 %v332, %v306
        %v336 = vmul.f32 %v332, %v329
        %v337 = vadd.f32 %v333, %v165
        %v338 = vadd.f32 %v334, %v166
        %v339 = vadd.f32 %v335, %v167
        %v340 = vadd.f32 %v336, %v168
        %341 = vst [vmem:[%s164] sm:$0xff] %v337
        %342 = vst.msk [vmem:[%s164 + $0x8] sm:$0xff] %vm169, %v338
        %343 = vst [vmem:[%s164 + $0x10] sm:$0xff] %v339
        %344 = vst.msk [vmem:[%s164 + $0x18] sm:$0xff] %vm169, %v340
        %s345 = sand.u32 %s75, 1
        %s346 = scalar_lea.sflag [#allocation5], %s345
        %s347 = sand.u32 %s75, 1
        %s348 = smul.addr %s347, 32
        %s349 = scalar_lea.vmem [#allocation6], %s348
        // Predicated region
        $region33: #{tpu_custom_call.1} parent=27 // pred_check
          %p350 = pneg %p85
        $region34: #{tpu_custom_call.1} parent=27 // pred_check_branch
          %352 = sbr.rel (%p350) target = $region36
        $region35: #{tpu_custom_call.1} parent=27 // pred_region
          %354 = vsyncadd %s346, 0
          %s355 = smul.addr %s20, 4
          %s356 = smul.addr %s355, 8
          %s357 = scalar_lea.hbm %s2, %s356
          %s358 = sshll.u32 %s349, 4
          %s359 = int_to_ptr.vmem [resolvable:$true] %s358
          %s360 = sshll.u32 %s357, 4
          %s361 = int_to_ptr.hbm [resolvable:$true] %s360
          %366 = dma.vmem_to_hbm [thread:$0]  %s359, 512, %s361, %s346, 256, 256, 16
        $region36: #{tpu_custom_call.1} parent=27 // pred_fallthru
          _
      $region28: #{tpu_custom_call.1} parent=5 // pred_fallthru
        _
      %p367 = scmp.le.s32.totalorder 2, %s15
      // Predicated region
      $region37: #{tpu_custom_call.1} parent=5 // pred_check
        %p368 = pneg %p367
      $region38: #{tpu_custom_call.1} parent=5 // pred_check_branch
        %370 = sbr.rel (%p368) target = $region40
      $region39: #{tpu_custom_call.1} parent=5 // pred_region
        %s371 = ssub.s32 %s15, 2
        // Predicated region
        $region41: #{tpu_custom_call.1} parent=39 // pred_check
          %p372 = pneg %p91
        $region42: #{tpu_custom_call.1} parent=39 // pred_check_branch
          %374 = sbr.rel (%p372) target = $region44
        $region43: #{tpu_custom_call.1} parent=39 // pred_region
          %s375 = sand.u32 %s76, 1
          %s376 = scalar_lea.sflag [#allocation5], %s375
          %s377 = sand.u32 %s76, 1
          %s378 = smul.addr %s377, 32
          %s379 = scalar_lea.vmem [#allocation6], %s378
          %381 = dma.done %s376, 512
        $region44: #{tpu_custom_call.1} parent=39 // pred_fallthru
          _
      $region40: #{tpu_custom_call.1} parent=5 // pred_fallthru
        _
    $region6: #{tpu_custom_call.1} parent=1 // loop_footer
      %s19 = sadd.s32 1, %s15
    $region7: #{tpu_custom_call.1} parent=1 // loop_footer_branch
      %14 = sbr.rel target = $region3
    $region8: #{tpu_custom_call.1} parent=1 // loop_exit
      _
    %382 = vsyncpa [#allocation4], 1
    %s383 = scalar_lea.sflag [#allocation4], 1
    %384 = vsyncpa %s383, 1
    %385 = vsyncpa [#allocation5], 1
    %s386 = scalar_lea.sflag [#allocation5], 1
    %387 = vsyncpa %s386, 1

</llo_original>
